<compile_context>
chip_gen: v5e
topology: v5e:2x2
jax: 0.10.0
libtpu: 0.0.40
codegen_flags: <defaults>
</compile_context>

<pallas_src>
import math
from functools import partial

import jax
import jax.numpy as jnp
from jax.experimental import pallas as pl
from jax.experimental.pallas import tpu as pltpu

NEG_INF = -1e30   # additive mask value (kept in f32; never cast to bf16)
M_INIT = -1e9     # online-softmax running-max init: > NEG_INF so that masked
                  # exp(e - m) underflows to exactly 0 even in fully-masked blocks


def _round_up(x, m):
    return ((x + m - 1) // m) * m


# ---------------------------------------------------------------------------
# Pass 1: feature projection + per-node attention logits
# ---------------------------------------------------------------------------
def proj_kernel(feat_ref, w_ref, war_ref, walt_ref, hd_ref, er_ref, elt_ref):
    feat = feat_ref[...]                                       # (tn, D_in) f32
    # Main projection with bf16 MXU operands (f32 accumulation).  Storing the
    # result as bf16 halves HBM/VMEM traffic feeding pass 2's A@V matmuls.
    feat_hd = jnp.dot(feat.astype(jnp.bfloat16), w_ref[...],
                      preferred_element_type=jnp.float32)      # (tn, HD_pad)
    hd_ref[...] = feat_hd.astype(jnp.bfloat16)
    # Attention logits via the exact f32 path el/er = feat @ (W @ a): keeps the
    # softmax logits free of bf16 operand rounding.  Both outputs are
    # lane-dense (>=128-lane) stores.
    er_ref[...] = jnp.dot(feat, war_ref[...],
                          preferred_element_type=jnp.float32)  # (tn, 128)
    # el produced already transposed (heads on sublanes, nodes on lanes), so
    # pass 2's (1, tile_src) broadcasts need no host-side transpose.
    elt_ref[...] = jax.lax.dot_general(
        walt_ref[...], feat, (((1,), (1,)), ((), ())),
        preferred_element_type=jnp.float32)                    # (H_pad, tn)


# ---------------------------------------------------------------------------
# Pass 2: tiled edge-softmax attention (flash-style online softmax)
# ---------------------------------------------------------------------------
def attn_kernel(er_ref, elt_ref, hd_ref, adj_ref, bias_ref, exp_ref, out_ref,
                m_ref, l_ref, acc_ref, pv_ref,
                *, num_heads, out_feats, negative_slope):
    j = pl.program_id(1)

    @pl.when(j == 0)
    def _init():
        m_ref[...] = jnp.full(m_ref.shape, M_INIT, jnp.float32)
        l_ref[...] = jnp.zeros(l_ref.shape, jnp.float32)
        acc_ref[...] = jnp.zeros(acc_ref.shape, jnp.float32)
        pv_ref[...] = jnp.zeros(pv_ref.shape, jnp.float32)   # padded lanes stay 0

    # int8 compare feeds the select directly: no full-tile int8->f32 convert.
    maskbias = jnp.where(adj_ref[...] != 0,
                         jnp.float32(0.0), jnp.float32(NEG_INF))   # (td, ts)
    hd = hd_ref[...]                                               # (ts, HD_pad) bf16
    m_prev = m_ref[...]                                            # (td, H_pad)

    # num_heads is small (4); static unroll is fine.
    # TODO(synk): lax.fori_loop(unroll=True) / grid axis over heads if H grows.
    for h in range(num_heads):
        sl = slice(h * out_feats, (h + 1) * out_feats)
        e = er_ref[:, h:h + 1] + elt_ref[h:h + 1, :]         # u_add_v
        e = jnp.maximum(e, negative_slope * e)               # LeakyReLU (0<slope<1)
        e = e + maskbias                                     # mask non-edges
        mp = m_prev[:, h:h + 1]
        mn = jnp.maximum(mp, jnp.max(e, axis=-1, keepdims=True))
        p = jnp.exp(e - mn)                                  # masked entries -> 0
        alpha = jnp.exp(mp - mn)
        l_ref[:, h:h + 1] = (alpha * l_ref[:, h:h + 1]
                             + jnp.sum(p, axis=-1, keepdims=True))
        m_ref[:, h:h + 1] = mn
        # Unnormalised per-head messages staged into a lane-dense f32 scratch
        # (bf16 MXU operands, f32 accumulate).
        pv_ref[:, sl] = jnp.dot(p.astype(jnp.bfloat16), hd[:, sl],
                                preferred_element_type=jnp.float32)

    # ONE wide FMA on the 128-lane accumulator per block: expand per-head alpha
    # across its out_feats lanes with a tiny 0/1 expander matmul (exact in f32).
    alpha_all = jnp.exp(m_prev - m_ref[...])                       # (td, H_pad)
    alpha_full = jnp.dot(alpha_all, exp_ref[...],
                         preferred_element_type=jnp.float32)       # (td, HD_pad)
    acc_ref[...] = alpha_full * acc_ref[...] + pv_ref[...]

    @pl.when(j == pl.num_programs(1) - 1)
    def _finalize():
        denom = l_ref[...]                                         # (td, H_pad)
        denom = jnp.where(denom > 0.0, denom, 1.0)   # guard padded / 0-deg rows
        # Exact reciprocal (once per dst tile -> nearly free), expanded to the
        # full lane width; single wide multiply + bias add.
        inv_full = jnp.dot(1.0 / denom, exp_ref[...],
                           preferred_element_type=jnp.float32)     # (td, HD_pad)
        out_ref[...] = acc_ref[...] * inv_full + bias_ref[...]


# ---------------------------------------------------------------------------
# Wrapper
# ---------------------------------------------------------------------------
def gat_conv(feat, adj, w, attn_l, attn_r, bias, *, num_heads, out_feats,
             negative_slope=0.2, tile_n=None, tile_dst=None, tile_src=None):
    """feat: (N, D_in) f32; adj: (N, N) A[dst, src] (nonzero = edge);
    w: (D_in, H*D_out) (transpose of torch fc.weight); attn_l/attn_r: (H, D_out);
    bias: (H*D_out,).  Returns (N, H, D_out) f32."""
    N, D_in = feat.shape
    HD = num_heads * out_feats
    HD_pad = _round_up(HD, 128)                 # lane-dense output width
    H_pad = _round_up(num_heads, 8)
    f32 = jnp.float32
    n128 = _round_up(N, 128)

    # Pass-2 tiles: 512 default (amortises ~0.35us/step pipeline overhead and
    # cuts feat_hd HBM re-streaming ~ N^2*HD_pad*2B / tile_dst); keep >= 2 dst
    # blocks when possible so both TCs (megacore / v7x) get "parallel" work.
    # 512 is also a multiple of 256 -> full-width K pushes on v6e/v7x MXUs.
    if tile_src is None:
        tile_src = min(512, n128)
    if tile_dst is None:
        tile_dst = min(512, n128)
        while tile_dst > 128 and n128 // tile_dst < 2:
            tile_dst //= 2
    if tile_n is None:
        tile_n = min(512, n128)
    N_pad = _round_up(N, math.lcm(tile_n, tile_dst, tile_src))

    # ---- host-side layout plumbing / padding ----
    feat_p = jnp.zeros((N_pad, D_in), f32).at[:N].set(feat.astype(f32))
    w_bf = (jnp.zeros((D_in, HD_pad), f32).at[:, :HD].set(w.astype(f32))
            .astype(jnp.bfloat16))
    # Folded logit weights: (W @ a_l), (W @ a_r) built once on host in f32.
    w3 = w.astype(f32).reshape(D_in, num_heads, out_feats)
    wa_r = jnp.einsum('khf,hf->kh', w3, attn_r.astype(f32))      # (D_in, H)
    wa_l = jnp.einsum('khf,hf->kh', w3, attn_l.astype(f32))      # (D_in, H)
    war = jnp.zeros((D_in, 128), f32).at[:, :num_heads].set(wa_r)
    walt = jnp.zeros((H_pad, D_in), f32).at[:num_heads, :].set(wa_l.T)
    bias_p = jnp.zeros((1, HD_pad), f32).at[0, :HD].set(bias.astype(f32))
    # 0/1 expander: head lane -> that head's out_feats lanes (used for alpha
    # and 1/l expansion so accumulator updates are one wide FMA).
    expander = jnp.zeros((H_pad, HD_pad), f32)
    for h in range(num_heads):
        expander = expander.at[h, h * out_feats:(h + 1) * out_feats].set(1.0)
    # int8 adjacency: 4x less HBM traffic / VMEM than f32.
    adj_i8 = jnp.zeros((N_pad, N_pad), jnp.int8).at[:N, :N].set(
        (adj != 0).astype(jnp.int8))

    # ---- pass 1: projection + logits ----
    feat_hd, er, elt = pl.pallas_call(
        proj_kernel,
        out_shape=(jax.ShapeDtypeStruct((N_pad, HD_pad), jnp.bfloat16),
                   jax.ShapeDtypeStruct((N_pad, 128), f32),     # er, lane-dense
                   jax.ShapeDtypeStruct((H_pad, N_pad), f32)),  # el^T, lane-dense
        grid=(N_pad // tile_n,),
        in_specs=[pl.BlockSpec((tile_n, D_in), lambda i: (i, 0)),
                  pl.BlockSpec((D_in, HD_pad), lambda i: (0, 0)),
                  pl.BlockSpec((D_in, 128), lambda i: (0, 0)),
                  pl.BlockSpec((H_pad, D_in), lambda i: (0, 0))],
        out_specs=(pl.BlockSpec((tile_n, HD_pad), lambda i: (i, 0)),
                   pl.BlockSpec((tile_n, 128), lambda i: (i, 0)),
                   pl.BlockSpec((H_pad, tile_n), lambda i: (0, i))),
        compiler_params=pltpu.CompilerParams(
            dimension_semantics=("parallel",),
            vmem_limit_bytes=32 * 1024 * 1024),
    )(feat_p, w_bf, war, walt)

    # ---- pass 2: tiled attention with online softmax ----
    kernel = partial(attn_kernel, num_heads=num_heads, out_feats=out_feats,
                     negative_slope=negative_slope)
    out = pl.pallas_call(
        kernel,
        out_shape=jax.ShapeDtypeStruct((N_pad, HD_pad), f32),
        grid=(N_pad // tile_dst, N_pad // tile_src),
        in_specs=[pl.BlockSpec((tile_dst, 128), lambda i, j: (i, 0)),      # er[dst]
                  pl.BlockSpec((H_pad, tile_src), lambda i, j: (0, j)),    # el^T[src]
                  pl.BlockSpec((tile_src, HD_pad), lambda i, j: (j, 0)),   # feat_hd[src]
                  pl.BlockSpec((tile_dst, tile_src), lambda i, j: (i, j)), # adj block
                  pl.BlockSpec((1, HD_pad), lambda i, j: (0, 0)),          # bias
                  pl.BlockSpec((H_pad, HD_pad), lambda i, j: (0, 0))],     # expander
        out_specs=pl.BlockSpec((tile_dst, HD_pad), lambda i, j: (i, 0)),
        scratch_shapes=[pltpu.VMEM((tile_dst, H_pad), f32),    # running max m
                        pltpu.VMEM((tile_dst, H_pad), f32),    # running denom l
                        pltpu.VMEM((tile_dst, HD_pad), f32),   # output accumulator
                        pltpu.VMEM((tile_dst, HD_pad), f32)],  # lane-dense p@v staging
        compiler_params=pltpu.CompilerParams(
            dimension_semantics=("parallel", "arbitrary"),
            vmem_limit_bytes=32 * 1024 * 1024),
    )(er, elt, feat_hd, adj_i8, bias_p, expander)

    return out[:N, :HD].reshape(N, num_heads, out_feats)


# ---------------------------------------------------------------------------
# Pure-JAX reference (DGL GATConv forward semantics)
# ---------------------------------------------------------------------------
def gat_conv_reference(feat, adj, w, attn_l, attn_r, bias, *, num_heads,
                       out_feats, negative_slope=0.2):
    N = feat.shape[0]
    feat_hd = (feat @ w).reshape(N, num_heads, out_feats)
    el = (feat_hd * attn_l[None]).sum(-1)                   # (N, H)
    er = (feat_hd * attn_r[None]).sum(-1)                   # (N, H)
    # e[dst, src, h] = leaky_relu(el[src] + er[dst])
    e = er[:, None, :] + el[None, :, :]
    e = jnp.where(e > 0, e, negative_slope * e)
    mask = (adj != 0)[:, :, None]
    e = jnp.where(mask, e, NEG_INF)
    e = e - e.max(axis=1, keepdims=True)
    p = jnp.where(mask, jnp.exp(e), 0.0)
    a = p / p.sum(axis=1, keepdims=True)                    # (N_dst, N_src, H)
    rst = jnp.einsum('dsh,shf->dhf', a, feat_hd)
    return rst + bias.reshape(1, num_heads, out_feats)


if __name__ == "__main__":
    N, D_IN, H, D_OUT = 8, 32, 4, 8  # small shapes consistent with the module

    key = jax.random.PRNGKey(0)
    k_feat, k_w, k_al, k_ar, k_adj = jax.random.split(key, 5)

    gain = math.sqrt(2.0)  # nn.init.calculate_gain('relu')
    # fc.weight is (H*D_out, D_in) in torch; we store its transpose (D_in, H*D_out)
    std_w = gain * math.sqrt(2.0 / (D_IN + H * D_OUT))
    w = std_w * jax.random.normal(k_w, (D_IN, H * D_OUT), jnp.float32)
    std_a = gain * math.sqrt(2.0 / (H + D_OUT))  # xavier on (1, H, D_out)
    attn_l = std_a * jax.random.normal(k_al, (H, D_OUT), jnp.float32)
    attn_r = std_a * jax.random.normal(k_ar, (H, D_OUT), jnp.float32)
    bias = jnp.zeros((H * D_OUT,), jnp.float32)             # init.constant_(bias, 0)

    feat = jax.random.normal(k_feat, (N, D_IN), jnp.float32)

    # Random directed graph with self-loops (in-degree >= 1 everywhere, so the
    # allow_zero_in_degree check of the module would pass).
    adj = jax.random.bernoulli(k_adj, 0.4, (N, N)).astype(jnp.float32)
    adj = jnp.maximum(adj, jnp.eye(N, dtype=jnp.float32))   # A[dst, src]

    out = gat_conv(feat, adj, w, attn_l, attn_r, bias,
                   num_heads=H, out_feats=D_OUT)
    out = jax.block_until_ready(out)

    ref = gat_conv_reference(feat, adj, w, attn_l, attn_r, bias,
                             num_heads=H, out_feats=D_OUT)
    assert out.shape == (N, H, D_OUT)
    assert bool(jnp.all(jnp.isfinite(out))), "non-finite values in kernel output"
    # Tolerance reflects bf16 MXU operands in the projection and A@V matmuls
    # (weights/features bf16-rounded); attention logits use an exact f32 path
    # so the softmax itself is not perturbed, and normalisation is exact.
    max_err = float(jnp.max(jnp.abs(out - ref)))
    assert jnp.allclose(out, ref, atol=3e-2, rtol=3e-2), (
        f"mismatch vs JAX reference (max abs err {max_err})")

    print("KERNEL_OK")
</pallas_src>

<mosaic_0001>
module attributes {stable_mosaic.version = 11 : i64} {
  func.func @proj_kernel(%arg0: i32, %arg1: memref<128x32xf32, #tpu.memory_space<vmem>>, %arg2: memref<32x128xbf16, #tpu.memory_space<vmem>>, %arg3: memref<32x128xf32, #tpu.memory_space<vmem>>, %arg4: memref<8x32xf32, #tpu.memory_space<vmem>>, %arg5: memref<128x128xbf16, #tpu.memory_space<vmem>>, %arg6: memref<128x128xf32, #tpu.memory_space<vmem>>, %arg7: memref<8x128xf32, #tpu.memory_space<vmem>>) attributes {dimension_semantics = [#tpu.dimension_semantics<parallel>], iteration_bounds = array<i64: 1>, scalar_prefetch = 0 : i64, scratch_operands = 0 : i64, tpu.core_type = #tpu.core_type<tc>, window_params = [{transform_indices = @transform_0, window_bounds = array<i64: 128, 32>}, {pipeline_mode = #tpu.pipeline_mode<synchronous>, transform_indices = @transform_1, window_bounds = array<i64: 32, 128>}, {pipeline_mode = #tpu.pipeline_mode<synchronous>, transform_indices = @transform_2, window_bounds = array<i64: 32, 128>}, {pipeline_mode = #tpu.pipeline_mode<synchronous>, transform_indices = @transform_3, window_bounds = array<i64: 8, 32>}, {transform_indices = @transform_4, window_bounds = array<i64: 128, 128>}, {transform_indices = @transform_5, window_bounds = array<i64: 128, 128>}, {transform_indices = @transform_6, window_bounds = array<i64: 8, 128>}]} {
    %c0 = arith.constant 0 : index
    %c0_0 = arith.constant 0 : index
    %0 = vector.load %arg1[%c0, %c0_0] : memref<128x32xf32, #tpu.memory_space<vmem>>, vector<128x32xf32>
    %1 = arith.truncf %0 : vector<128x32xf32> to vector<128x32xbf16>
    %c0_1 = arith.constant 0 : index
    %c0_2 = arith.constant 0 : index
    %2 = vector.load %arg2[%c0_1, %c0_2] : memref<32x128xbf16, #tpu.memory_space<vmem>>, vector<32x128xbf16>
    %cst = arith.constant dense<0.000000e+00> : vector<128x128xf32>
    %3 = tpu.matmul %1, %2, %cst {dimension_numbers = #tpu.dot_dimension_numbers<[1], [0], [0], [1], [0, 0, 1, 1], [], []>} : vector<128x32xbf16>, vector<32x128xbf16>, vector<128x128xf32> -> vector<128x128xf32>
    %4 = arith.truncf %3 : vector<128x128xf32> to vector<128x128xbf16>
    %c0_3 = arith.constant 0 : index
    %c0_4 = arith.constant 0 : index
    %5 = vector.load %arg5[%c0_3, %c0_4] : memref<128x128xbf16, #tpu.memory_space<vmem>>, vector<128x128xbf16>
    tpu.vector_store %arg5[%c0_3, %c0_4], %4 {strides = array<i32>} : memref<128x128xbf16, #tpu.memory_space<vmem>>, vector<128x128xbf16>,
    %c0_5 = arith.constant 0 : index
    %c0_6 = arith.constant 0 : index
    %6 = vector.load %arg3[%c0_5, %c0_6] : memref<32x128xf32, #tpu.memory_space<vmem>>, vector<32x128xf32>
    %cst_7 = arith.constant dense<0.000000e+00> : vector<128x128xf32>
    %7 = tpu.matmul %0, %6, %cst_7 {dimension_numbers = #tpu.dot_dimension_numbers<[1], [0], [0], [1], [0, 0, 1, 1], [], []>} : vector<128x32xf32>, vector<32x128xf32>, vector<128x128xf32> -> vector<128x128xf32>
    %c0_8 = arith.constant 0 : index
    %c0_9 = arith.constant 0 : index
    %8 = vector.load %arg6[%c0_8, %c0_9] : memref<128x128xf32, #tpu.memory_space<vmem>>, vector<128x128xf32>
    tpu.vector_store %arg6[%c0_8, %c0_9], %7 {strides = array<i32>} : memref<128x128xf32, #tpu.memory_space<vmem>>, vector<128x128xf32>,
    %c0_10 = arith.constant 0 : index
    %c0_11 = arith.constant 0 : index
    %9 = vector.load %arg4[%c0_10, %c0_11] : memref<8x32xf32, #tpu.memory_space<vmem>>, vector<8x32xf32>
    %cst_12 = arith.constant dense<0.000000e+00> : vector<8x128xf32>
    %10 = tpu.matmul %9, %0, %cst_12 {dimension_numbers = #tpu.dot_dimension_numbers<[1], [1], [0], [0], [0, 0, 1, 0], [], []>} : vector<8x32xf32>, vector<128x32xf32>, vector<8x128xf32> -> vector<8x128xf32>
    %c0_13 = arith.constant 0 : index
    %c0_14 = arith.constant 0 : index
    %11 = vector.load %arg7[%c0_13, %c0_14] : memref<8x128xf32, #tpu.memory_space<vmem>>, vector<8x128xf32>
    tpu.vector_store %arg7[%c0_13, %c0_14], %10 {strides = array<i32>} : memref<8x128xf32, #tpu.memory_space<vmem>>, vector<8x128xf32>,
    return
  }
  func.func @transform_0(%arg0: i32) -> (i32, i32) {
    %c0_i32 = arith.constant 0 : i32
    %c0_i32_0 = arith.constant 0 : i32
    return %arg0, %c0_i32 : i32, i32
  }
  func.func @transform_1(%arg0: i32) -> (i32, i32) {
    %c0_i32 = arith.constant 0 : i32
    %c0_i32_0 = arith.constant 0 : i32
    %c0_i32_1 = arith.constant 0 : i32
    return %c0_i32, %c0_i32_0 : i32, i32
  }
  func.func @transform_2(%arg0: i32) -> (i32, i32) {
    %c0_i32 = arith.constant 0 : i32
    %c0_i32_0 = arith.constant 0 : i32
    %c0_i32_1 = arith.constant 0 : i32
    return %c0_i32, %c0_i32_0 : i32, i32
  }
  func.func @transform_3(%arg0: i32) -> (i32, i32) {
    %c0_i32 = arith.constant 0 : i32
    %c0_i32_0 = arith.constant 0 : i32
    %c0_i32_1 = arith.constant 0 : i32
    return %c0_i32, %c0_i32_0 : i32, i32
  }
  func.func @transform_4(%arg0: i32) -> (i32, i32) {
    %c0_i32 = arith.constant 0 : i32
    %c0_i32_0 = arith.constant 0 : i32
    return %arg0, %c0_i32 : i32, i32
  }
  func.func @transform_5(%arg0: i32) -> (i32, i32) {
    %c0_i32 = arith.constant 0 : i32
    %c0_i32_0 = arith.constant 0 : i32
    return %arg0, %c0_i32 : i32, i32
  }
  func.func @transform_6(%arg0: i32) -> (i32, i32) {
    %c0_i32 = arith.constant 0 : i32
    %c0_i32_0 = arith.constant 0 : i32
    return %c0_i32, %arg0 : i32, i32
  }
}

</mosaic_0001>

<llo_original>
// kernel: tpu_custom_call.1
$region0: #{tpu_custom_call.1}
  #allocation0 [shape = 'u32[]', space=smem, size = 0x4, offset = 0x4, fixed_abs, tag = 'smem constant byte address 0x4 - core index']
  #allocation1 [shape = 'u32[72,128]{1,0:T(1,128)}', space=vmem, size = 0x9000, scoped, tag = 'internal scratch']
  %s0 = inlined_call_operand.vmem [shape: f32[128,32], index: 0, kind: input, shape index: {}]
  %s1 = inlined_call_operand.vmem [shape: bf16[32,128], index: 1, kind: input, shape index: {}]
  %s2 = inlined_call_operand.vmem [shape: f32[32,128], index: 2, kind: input, shape index: {}]
  %s3 = inlined_call_operand.vmem [shape: f32[8,32], index: 3, kind: input, shape index: {}]
  %s4 = inlined_call_operand.hbm [shape: bf16[128,128], index: 4, kind: output, shape index: {0}]
  %s5 = inlined_call_operand.hbm [shape: f32[128,128], index: 5, kind: output, shape index: {1}]
  %s6 = inlined_call_operand.hbm [shape: f32[8,128], index: 6, kind: output, shape index: {2}]
  %7 = xla_tuple %s4, %s5, %s6
  %s8 = sld [smem:[#allocation0]]
  $region42: #{tpu_custom_call.1} parent=0
    _
  %s10 = ssub.s32 1, %s8
  %s11 = scalar_select 0, %s10, %s8
  $region1: #{tpu_custom_call.1} parent=0
    #allocation2 [shape = 'u8[32768]{0}', space=vmem, size = 0x8000, scoped, tag = 'output window, operand 0, single buffered']
    #allocation3 [shape = 's32[1]{0}', space=sflag, size = 0x4, scoped, tag = 'scoped memory for tpu_custom_call.1']
    #allocation4 [shape = 'u8[65536]{0}', space=vmem, size = 0x10000, scoped, tag = 'output window, operand 1, single buffered']
    #allocation5 [shape = 's32[1]{0}', space=sflag, size = 0x4, scoped, tag = 'scoped memory for tpu_custom_call.1']
    #allocation6 [shape = 'u8[4096]{0}', space=vmem, size = 0x1000, scoped, tag = 'output window, operand 2, single buffered']
    %12 = vsyncpa [#allocation3], 0
    %13 = vsyncpa [#allocation5], 0
    // Predicated region
    $region2: #{tpu_custom_call.1} parent=1 // pred_check
      _
    $region3: #{tpu_custom_call.1} parent=1 // pred_check_branch
      %15 = sbr.rel (0) target = $region5
    $region4: #{tpu_custom_call.1} parent=1 // pred_region
      _
    $region5: #{tpu_custom_call.1} parent=1 // pred_fallthru
      _
    // Predicated region
    $region6: #{tpu_custom_call.1} parent=1 // pred_check
      _
    $region7: #{tpu_custom_call.1} parent=1 // pred_check_branch
      %17 = sbr.rel (0) target = $region9
    $region8: #{tpu_custom_call.1} parent=1 // pred_region
      _
    $region9: #{tpu_custom_call.1} parent=1 // pred_fallthru
      _
    // Predicated region
    $region10: #{tpu_custom_call.1} parent=1 // pred_check
      _
    $region11: #{tpu_custom_call.1} parent=1 // pred_check_branch
      %19 = sbr.rel (0) target = $region13
    $region12: #{tpu_custom_call.1} parent=1 // pred_region
      _
    $region13: #{tpu_custom_call.1} parent=1 // pred_fallthru
      _
    // Predicated region
    $region14: #{tpu_custom_call.1} parent=1 // pred_check
      _
    $region15: #{tpu_custom_call.1} parent=1 // pred_check_branch
      %21 = sbr.rel (0) target = $region17
    $region16: #{tpu_custom_call.1} parent=1 // pred_region
      _
    $region17: #{tpu_custom_call.1} parent=1 // pred_fallthru
      _
    %v23 = vld [vmem:[%s0] sm:$0xff]
    %v24 = vld [vmem:[%s0 + $0x8] sm:$0xff]
    %v25 = vld [vmem:[%s0 + $0x10] sm:$0xff]
    %v26 = vld [vmem:[%s0 + $0x18] sm:$0xff]
    %v27 = vld [vmem:[%s0 + $0x20] sm:$0xff]
    %v28 = vld [vmem:[%s0 + $0x28] sm:$0xff]
    %v29 = vld [vmem:[%s0 + $0x30] sm:$0xff]
    %v30 = vld [vmem:[%s0 + $0x38] sm:$0xff]
    %v31 = vld [vmem:[%s0 + $0x40] sm:$0xff]
    %v32 = vld [vmem:[%s0 + $0x48] sm:$0xff]
    %v33 = vld [vmem:[%s0 + $0x50] sm:$0xff]
    %v34 = vld [vmem:[%s0 + $0x58] sm:$0xff]
    %v35 = vld [vmem:[%s0 + $0x60] sm:$0xff]
    %v36 = vld [vmem:[%s0 + $0x68] sm:$0xff]
    %v37 = vld [vmem:[%s0 + $0x70] sm:$0xff]
    %v38 = vld [vmem:[%s0 + $0x78] sm:$0xff]
    %v39 = vpack.c.bf16 %v24, %v23
    %v40 = vpack.c.bf16 %v26, %v25
    %v41 = vpack.c.bf16 %v28, %v27
    %v42 = vpack.c.bf16 %v30, %v29
    %v43 = vpack.c.bf16 %v32, %v31
    %v44 = vpack.c.bf16 %v34, %v33
    %v45 = vpack.c.bf16 %v36, %v35
    %v46 = vpack.c.bf16 %v38, %v37
    %v47 = vld [vmem:[%s1] sm:$0xf]
    %v48 = vld [vmem:[%s1 + $0x4] sm:$0xf]
    %v49 = vld [vmem:[%s1 + $0x8] sm:$0xf]
    %v50 = vld [vmem:[%s1 + $0xc] sm:$0xf]
    %v55 = vunpack.c.l.b16 %v47
    %v56 = vunpack.c.l.b16 %v48
    %v57 = vunpack.c.l.b16 %v49
    %v58 = vunpack.c.l.b16 %v50
    %v59 = vpack.c.b16 %v56, %v55
    %v60 = vpack.c.b16 %v58, %v57
    %vm63 = vcmask 261120
    %v65 = vsel %vm63, %v39, 0
    %v68 = vsel %vm63, %v40, 0
    %v71 = vsel %vm63, %v41, 0
    %v74 = vsel %vm63, %v42, 0
    %v77 = vsel %vm63, %v43, 0
    %v80 = vsel %vm63, %v44, 0
    %v83 = vsel %vm63, %v45, 0
    %v86 = vsel %vm63, %v46, 0
    %88 = vmatpush.bf16.msra.mxu0 0
    %89 = vmatpush.bf16.msra.mxu0 0
    %90 = vmatpush.bf16.msra.mxu0 0
    %91 = vmatpush.bf16.msra.mxu0 0
    %92 = vmatpush.bf16.msra.mxu0 0
    %93 = vmatpush.bf16.msra.mxu0 0
    %94 = vmatpush.bf16.msra.mxu0 %v60
    %95 = vmatpush.bf16.msra.mxu0 %v59
    %96 = vmatmul.bf16.gmra.mxu0 %v65
    %v97 = vpop.f32.mrf.mxu0
    %v98 = vadd.f32 0.0, %v97
    %v99 = vpop.f32.mrf.mxu0
    %v100 = vadd.f32 0.0, %v99
    %101 = vmatmul.bf16.gmra.mxu0 %v68
    %v102 = vpop.f32.mrf.mxu0
    %v103 = vadd.f32 0.0, %v102
    %v104 = vpop.f32.mrf.mxu0
    %v105 = vadd.f32 0.0, %v104
    %106 = vmatmul.bf16.gmra.mxu0 %v71
    %v107 = vpop.f32.mrf.mxu0
    %v108 = vadd.f32 0.0, %v107
    %v109 = vpop.f32.mrf.mxu0
    %v110 = vadd.f32 0.0, %v109
    %111 = vmatmul.bf16.gmra.mxu0 %v74
    %v112 = vpop.f32.mrf.mxu0
    %v113 = vadd.f32 0.0, %v112
    %v114 = vpop.f32.mrf.mxu0
    %v115 = vadd.f32 0.0, %v114
    %116 = vmatmul.bf16.gmra.mxu0 %v77
    %v117 = vpop.f32.mrf.mxu0
    %v118 = vadd.f32 0.0, %v117
    %v119 = vpop.f32.mrf.mxu0
    %v120 = vadd.f32 0.0, %v119
    %121 = vmatmul.bf16.gmra.mxu0 %v80
    %v122 = vpop.f32.mrf.mxu0
    %v123 = vadd.f32 0.0, %v122
    %v124 = vpop.f32.mrf.mxu0
    %v125 = vadd.f32 0.0, %v124
    %126 = vmatmul.bf16.gmra.mxu0 %v83
    %v127 = vpop.f32.mrf.mxu0
    %v128 = vadd.f32 0.0, %v127
    %v129 = vpop.f32.mrf.mxu0
    %v130 = vadd.f32 0.0, %v129
    %131 = vmatmul.bf16.gmra.mxu0 %v86
    %v132 = vpop.f32.mrf.mxu0
    %v133 = vadd.f32 0.0, %v132
    %v134 = vpop.f32.mrf.mxu0
    %v135 = vadd.f32 0.0, %v134
    %136 = vdwg.mxu0
    %v137 = vpack.c.bf16 %v98, %v98
    %v138 = vpack.c.bf16 %v100, %v100
    %v139 = vpack.c.bf16 %v103, %v103
    %v140 = vpack.c.bf16 %v105, %v105
    %v141 = vpack.c.bf16 %v108, %v108
    %v142 = vpack.c.bf16 %v110, %v110
    %v143 = vpack.c.bf16 %v113, %v113
    %v144 = vpack.c.bf16 %v115, %v115
    %v145 = vpack.c.bf16 %v118, %v118
    %v146 = vpack.c.bf16 %v120, %v120
    %v147 = vpack.c.bf16 %v123, %v123
    %v148 = vpack.c.bf16 %v125, %v125
    %v149 = vpack.c.bf16 %v128, %v128
    %v150 = vpack.c.bf16 %v130, %v130
    %v151 = vpack.c.bf16 %v133, %v133
    %v152 = vpack.c.bf16 %v135, %v135
    %153 = vst [vmem:[#allocation2] sm:$0xf] %v137
    %154 = vst [vmem:[#allocation2 + $0x4] sm:$0xf] %v138
    %155 = vst [vmem:[#allocation2 + $0x8] sm:$0xf] %v139
    %156 = vst [vmem:[#allocation2 + $0xc] sm:$0xf] %v140
    %157 = vst [vmem:[#allocation2 + $0x10] sm:$0xf] %v141
    %158 = vst [vmem:[#allocation2 + $0x14] sm:$0xf] %v142
    %159 = vst [vmem:[#allocation2 + $0x18] sm:$0xf] %v143
    %160 = vst [vmem:[#allocation2 + $0x1c] sm:$0xf] %v144
    %161 = vst [vmem:[#allocation2 + $0x20] sm:$0xf] %v145
    %162 = vst [vmem:[#allocation2 + $0x24] sm:$0xf] %v146
    %163 = vst [vmem:[#allocation2 + $0x28] sm:$0xf] %v147
    %164 = vst [vmem:[#allocation2 + $0x2c] sm:$0xf] %v148
    %165 = vst [vmem:[#allocation2 + $0x30] sm:$0xf] %v149
    %166 = vst [vmem:[#allocation2 + $0x34] sm:$0xf] %v150
    %167 = vst [vmem:[#allocation2 + $0x38] sm:$0xf] %v151
    %168 = vst [vmem:[#allocation2 + $0x3c] sm:$0xf] %v152
    %v169 = vld [vmem:[%s2] sm:$0xff]
    %v170 = vld [vmem:[%s2 + $0x8] sm:$0xff]
    %v171 = vld [vmem:[%s2 + $0x10] sm:$0xff]
    %v172 = vld [vmem:[%s2 + $0x18] sm:$0xff]
    %v174 = vsel %vm63, %v23, 0
    %v177 = vsel %vm63, %v24, 0
    %v180 = vsel %vm63, %v25, 0
    %v183 = vsel %vm63, %v26, 0
    %v186 = vsel %vm63, %v27, 0
    %v189 = vsel %vm63, %v28, 0
    %v192 = vsel %vm63, %v29, 0
    %v195 = vsel %vm63, %v30, 0
    %v198 = vsel %vm63, %v31, 0
    %v201 = vsel %vm63, %v32, 0
    %v204 = vsel %vm63, %v33, 0
    %v207 = vsel %vm63, %v34, 0
    %v210 = vsel %vm63, %v35, 0
    %v213 = vsel %vm63, %v36, 0
    %v216 = vsel %vm63, %v37, 0
    %v219 = vsel %vm63, %v38, 0
    %221 = vmatpush.msra.mxu0 0.0
    %222 = vmatpush.msra.mxu0 0.0
    %223 = vmatpush.msra.mxu0 0.0
    %224 = vmatpush.msra.mxu0 0.0
    %225 = vmatpush.msra.mxu0 0.0
    %226 = vmatpush.msra.mxu0 0.0
    %227 = vmatpush.msra.mxu0 0.0
    %228 = vmatpush.msra.mxu0 0.0
    %229 = vmatpush.msra.mxu0 0.0
    %230 = vmatpush.msra.mxu0 0.0
    %231 = vmatpush.msra.mxu0 0.0
    %232 = vmatpush.msra.mxu0 0.0
    %233 = vmatpush.msra.mxu0 %v172
    %234 = vmatpush.msra.mxu0 %v171
    %235 = vmatpush.msra.mxu0 %v170
    %236 = vmatpush.msra.mxu0 %v169
    %237 = vmatmul.f32.gmra.mxu0 %v174
    %v238 = vpop.f32.mrf.mxu0
    %v239 = vadd.f32 0.0, %v238
    %240 = vmatmul.f32.gmra.mxu0 %v177
    %v241 = vpop.f32.mrf.mxu0
    %v242 = vadd.f32 0.0, %v241
    %243 = vmatmul.f32.gmra.mxu0 %v180
    %v244 = vpop.f32.mrf.mxu0
    %v245 = vadd.f32 0.0, %v244
    %246 = vmatmul.f32.gmra.mxu0 %v183
    %v247 = vpop.f32.mrf.mxu0
    %v248 = vadd.f32 0.0, %v247
    %249 = vmatmul.f32.gmra.mxu0 %v186
    %v250 = vpop.f32.mrf.mxu0
    %v251 = vadd.f32 0.0, %v250
    %252 = vmatmul.f32.gmra.mxu0 %v189
    %v253 = vpop.f32.mrf.mxu0
    %v254 = vadd.f32 0.0, %v253
    %255 = vmatmul.f32.gmra.mxu0 %v192
    %v256 = vpop.f32.mrf.mxu0
    %v257 = vadd.f32 0.0, %v256
    %258 = vmatmul.f32.gmra.mxu0 %v195
    %v259 = vpop.f32.mrf.mxu0
    %v260 = vadd.f32 0.0, %v259
    %261 = vmatmul.f32.gmra.mxu0 %v198
    %v262 = vpop.f32.mrf.mxu0
    %v263 = vadd.f32 0.0, %v262
    %264 = vmatmul.f32.gmra.mxu0 %v201
    %v265 = vpop.f32.mrf.mxu0
    %v266 = vadd.f32 0.0, %v265
    %267 = vmatmul.f32.gmra.mxu0 %v204
    %v268 = vpop.f32.mrf.mxu0
    %v269 = vadd.f32 0.0, %v268
    %270 = vmatmul.f32.gmra.mxu0 %v207
    %v271 = vpop.f32.mrf.mxu0
    %v272 = vadd.f32 0.0, %v271
    %273 = vmatmul.f32.gmra.mxu0 %v210
    %v274 = vpop.f32.mrf.mxu0
    %v275 = vadd.f32 0.0, %v274
    %276 = vmatmul.f32.gmra.mxu0 %v213
    %v277 = vpop.f32.mrf.mxu0
    %v278 = vadd.f32 0.0, %v277
    %279 = vmatmul.f32.gmra.mxu0 %v216
    %v280 = vpop.f32.mrf.mxu0
    %v281 = vadd.f32 0.0, %v280
    %282 = vmatmul.f32.gmra.mxu0 %v219
    %v283 = vpop.f32.mrf.mxu0
    %v284 = vadd.f32 0.0, %v283
    %285 = vdwg.mxu0
    %286 = vst [vmem:[#allocation4] sm:$0xff] %v239
    %287 = vst [vmem:[#allocation4 + $0x8] sm:$0xff] %v242
    %288 = vst [vmem:[#allocation4 + $0x10] sm:$0xff] %v245
    %289 = vst [vmem:[#allocation4 + $0x18] sm:$0xff] %v248
    %290 = vst [vmem:[#allocation4 + $0x20] sm:$0xff] %v251
    %291 = vst [vmem:[#allocation4 + $0x28] sm:$0xff] %v254
    %292 = vst [vmem:[#allocation4 + $0x30] sm:$0xff] %v257
    %293 = vst [vmem:[#allocation4 + $0x38] sm:$0xff] %v260
    %294 = vst [vmem:[#allocation4 + $0x40] sm:$0xff] %v263
    %295 = vst [vmem:[#allocation4 + $0x48] sm:$0xff] %v266
    %296 = vst [vmem:[#allocation4 + $0x50] sm:$0xff] %v269
    %297 = vst [vmem:[#allocation4 + $0x58] sm:$0xff] %v272
    %298 = vst [vmem:[#allocation4 + $0x60] sm:$0xff] %v275
    %299 = vst [vmem:[#allocation4 + $0x68] sm:$0xff] %v278
    %300 = vst [vmem:[#allocation4 + $0x70] sm:$0xff] %v281
    %301 = vst [vmem:[#allocation4 + $0x78] sm:$0xff] %v284
    %v302 = vld [vmem:[%s3] sm:$0xff]
    %v304 = vsel %vm63, %v302, 0
    %306 = vmatpush.xpose.msra.mxu0 %v219
    %307 = vmatpush.xpose.msra.mxu0 %v216
    %308 = vmatpush.xpose.msra.mxu0 %v213
    %309 = vmatpush.xpose.msra.mxu0 %v210
    %310 = vmatpush.xpose.msra.mxu0 %v207
    %311 = vmatpush.xpose.msra.mxu0 %v204
    %312 = vmatpush.xpose.msra.mxu0 %v201
    %313 = vmatpush.xpose.msra.mxu0 %v198
    %314 = vmatpush.xpose.msra.mxu0 %v195
    %315 = vmatpush.xpose.msra.mxu0 %v192
    %316 = vmatpush.xpose.msra.mxu0 %v189
    %317 = vmatpush.xpose.msra.mxu0 %v186
    %318 = vmatpush.xpose.msra.mxu0 %v183
    %319 = vmatpush.xpose.msra.mxu0 %v180
    %320 = vmatpush.xpose.msra.mxu0 %v177
    %321 = vmatpush.xpose.msra.mxu0 %v174
    %322 = vmatmul.f32.gmra.mxu0 %v304
    %v323 = vpop.f32.mrf.mxu0
    %v324 = vadd.f32 0.0, %v323
    %325 = vdwg.mxu0
    %326 = vst [vmem:[#allocation6] sm:$0xff] %v324
    // Predicated region
    $region18: #{tpu_custom_call.1} parent=1 // pred_check
      _
    $region19: #{tpu_custom_call.1} parent=1 // pred_check_branch
      %328 = sbr.rel (0) target = $region21
    $region20: #{tpu_custom_call.1} parent=1 // pred_region
      %330 = vsyncadd [#allocation3], 0
      %s331 = sshll.u32 [#allocation2], 4
      %s332 = int_to_ptr.vmem [resolvable:$true] %s331
      %s333 = sshll.u32 %s4, 4
      %s334 = int_to_ptr.hbm [resolvable:$true] %s333
      %339 = dma.vmem_to_hbm [thread:$0]  %s332, 1024, %s334, [#allocation3], 64, 64, 4
    $region21: #{tpu_custom_call.1} parent=1 // pred_fallthru
      _
    // Predicated region
    $region22: #{tpu_custom_call.1} parent=1 // pred_check
      _
    $region23: #{tpu_custom_call.1} parent=1 // pred_check_branch
      %341 = sbr.rel (0) target = $region25
    $region24: #{tpu_custom_call.1} parent=1 // pred_region
      %343 = vsyncadd [#allocation5], 0
      %s344 = sshll.u32 [#allocation4], 4
      %s345 = int_to_ptr.vmem [resolvable:$true] %s344
      %s346 = sshll.u32 %s5, 4
      %s347 = int_to_ptr.hbm [resolvable:$true] %s346
      %352 = dma.vmem_to_hbm [thread:$0]  %s345, 2048, %s347, [#allocation5], 128, 128, 8
    $region25: #{tpu_custom_call.1} parent=1 // pred_fallthru
      _
    // Predicated region
    $region26: #{tpu_custom_call.1} parent=1 // pred_check
      _
    $region27: #{tpu_custom_call.1} parent=1 // pred_check_branch
      %354 = sbr.rel (0) target = $region29
    $region28: #{tpu_custom_call.1} parent=1 // pred_region
      %356 = vsyncadd [#allocation5], 0
      %s358 = sshll.u32 [#allocation6], 4
      %s359 = int_to_ptr.vmem [resolvable:$true] %s358
      %s360 = sshll.u32 %s6, 4
      %s361 = int_to_ptr.hbm [resolvable:$true] %s360
      %363 = dma.vmem_to_hbm [thread:$0]  %s359, 128, %s361, [#allocation5]
    $region29: #{tpu_custom_call.1} parent=1 // pred_fallthru
      _
    // Predicated region
    $region30: #{tpu_custom_call.1} parent=1 // pred_check
      _
    $region31: #{tpu_custom_call.1} parent=1 // pred_check_branch
      %365 = sbr.rel (0) target = $region33
    $region32: #{tpu_custom_call.1} parent=1 // pred_region
      %367 = dma.done [#allocation3], 1024
    $region33: #{tpu_custom_call.1} parent=1 // pred_fallthru
      _
    // Predicated region
    $region34: #{tpu_custom_call.1} parent=1 // pred_check
      _
    $region35: #{tpu_custom_call.1} parent=1 // pred_check_branch
      %369 = sbr.rel (0) target = $region37
    $region36: #{tpu_custom_call.1} parent=1 // pred_region
      %371 = dma.done [#allocation5], 2048
    $region37: #{tpu_custom_call.1} parent=1 // pred_fallthru
      _
    // Predicated region
    $region38: #{tpu_custom_call.1} parent=1 // pred_check
      _
    $region39: #{tpu_custom_call.1} parent=1 // pred_check_branch
      %373 = sbr.rel (0) target = $region41
    $region40: #{tpu_custom_call.1} parent=1 // pred_region
      %375 = dma.done [#allocation5], 128
    $region41: #{tpu_custom_call.1} parent=1 // pred_fallthru
      _
    %376 = vsyncpa [#allocation3], 1
    %377 = vsyncpa [#allocation5], 1

</llo_original>
